<compile_context>
chip_gen: v6e
topology: v6e:2x2x1
jax: 0.10.0
libtpu: 0.0.40
codegen_flags: <defaults>
</compile_context>

<pallas_src>
import functools

import jax
import jax.numpy as jnp
from jax.experimental import pallas as pl
from jax.experimental.pallas import tpu as pltpu


# ----------------------------------------------------------------------------- kernel

def _predictor_kernel(graph_ref, w_ref, b_ref, out_ref, *,
                      n, f_in, hidden, enc, dec, n_graphs, w_off):
    n2, f2, h2, e2, d2 = 2 * n, 2 * f_in, 2 * hidden, 2 * enc, 2 * dec

    g = graph_ref[...]                       # bf16 graph slab
    adj = g[:n2, :n2]                        # [2N, 2N]  block-diag [A_fwd 0; 0 A_rev]
    h = g[:n2, n2:n2 + f2]                   # [2N, 2F]  block-structured [x 0; 0 x]
    pool = g[n2:n2 + n_graphs, :n2]          # [B, 2N]   [pool | pool]

    w = w_ref[...]                           # bf16 weight slab
    bias = b_ref[...]                        # f32 bias slab

    def mm(a, b):
        return jnp.dot(a, b, preferred_element_type=jnp.float32)

    # Block-structured bias: fwd-encoder nodes (top n rows) get [b_f | 0], rev nodes get [0 | b_r],
    # so the off-diagonal blocks of the activations stay exactly zero through the whole chain.
    row_is_fwd = jax.lax.broadcasted_iota(jnp.int32, (n2, 1), 0) < n

    def bias_rows(i):
        return jnp.where(row_is_fwd, bias[i:i + 1, :], bias[i + 1:i + 2, :])   # [2N, width]

    # --- two fused GIN layers (both encoders at once) ------------------------------------
    # layer spec: (wa_offset, wa_rows, wa_cols, wb_offset, wb_rows, wb_cols, bias_a, bias_b)
    layer_specs = (
        (w_off[0], f2, h2, w_off[1], h2, h2, 0, 2),
        (w_off[2], h2, h2, w_off[3], h2, e2, 4, 6),
    )
    for wa_off, wa_in, wa_out, wb_off, wb_in, wb_out, ba_i, bb_i in layer_specs:
        # GIN aggregation (eps = 0): (1+eps)*h + sum_{j in N(i)} h_j
        agg = (h.astype(jnp.float32) + mm(adj, h)).astype(jnp.bfloat16)
        wa = w[wa_off:wa_off + wa_in, :wa_out]
        h = jnp.maximum(mm(agg, wa) + bias_rows(ba_i)[:, :wa_out], 0.0).astype(jnp.bfloat16)
        wb = w[wb_off:wb_off + wb_in, :wb_out]
        h = jnp.maximum(mm(h, wb) + bias_rows(bb_i)[:, :wb_out], 0.0).astype(jnp.bfloat16)

    # --- global_mean_pool for both encoders at once:  [pool|pool] @ H = [emb_fwd | emb_rev] ----
    emb = mm(pool, h).astype(jnp.bfloat16)                               # [B, 2E]

    # --- decoder head ----------------------------------------------------------------------
    w_before = w[w_off[4]:w_off[4] + e2, :d2]                            # [2E, 2*dec]
    hd = jnp.maximum(mm(emb, w_before) + bias[8:9, :d2], 0.0).astype(jnp.bfloat16)
    w_mid = w[w_off[5]:w_off[5] + d2, :dec]                              # [2*dec, dec]
    hd = jnp.maximum(mm(hd, w_mid) + bias[9:10, :dec], 0.0)              # [B, dec] f32
    # F.dropout(p=0.1, training=False) -> identity in eval mode.
    # linear_mean as VPU multiply + lane reduction (avoid a 1-lane MXU push).
    w_mean_row = bias[10:11, :dec]                                       # [1, dec]
    b_mean = bias[11:12, 0:1]                                            # [1, 1]
    mean = jnp.sum(hd * w_mean_row, axis=-1, keepdims=True) + b_mean     # [B, 1]
    out_ref[...] = jax.nn.sigmoid(mean)


# ----------------------------------------------------------------------------- packing helpers

def _block_diag(wf, wr):
    rf, cf = wf.shape
    rr, cr = wr.shape
    out = jnp.zeros((rf + rr, cf + cr), jnp.float32)
    return out.at[:rf, :cf].set(wf).at[rf:, cf:].set(wr)


def _pad_cols(m, width):
    m = jnp.atleast_2d(m)
    return jnp.zeros((m.shape[0], width), jnp.float32).at[:, :m.shape[1]].set(m)


def _build_slabs(p, hidden, enc, dec):
    width = 2 * max(hidden, enc)          # 64 here; >= 2*dec and >= dec as well
    # ---- weight slab: block-diagonal fused GIN weights + decoder weights, stacked on rows
    mats = []
    for li in range(2):
        wf_a, _, wf_b, _ = p["fwd"][li]
        wr_a, _, wr_b, _ = p["rev"][li]
        mats.append(_block_diag(wf_a, wr_a))
        mats.append(_block_diag(wf_b, wr_b))
    mats.append(p["w_before"])
    mats.append(p["w_mid"])
    w_off, padded, r = [], [], 0
    for m in mats:
        w_off.append(r)
        padded.append(_pad_cols(m, width))
        r += m.shape[0]
    w_slab = jnp.concatenate(padded, 0).astype(jnp.bfloat16)

    # ---- bias slab (f32, tiny): rows 0..7 = fused GIN biases ([b_f|0] / [0|b_r] pairs),
    #      row 8 = b_before, 9 = b_mid, 10 = linear_mean weight row, 11 = linear_mean bias.
    b_rows = []
    for li in range(2):
        _, bf_a, _, bf_b = p["fwd"][li]
        _, br_a, _, br_b = p["rev"][li]
        for bf, br in ((bf_a, br_a), (bf_b, br_b)):
            b_rows.append(_pad_cols(jnp.concatenate([bf, jnp.zeros_like(br)])[None, :], width))
            b_rows.append(_pad_cols(jnp.concatenate([jnp.zeros_like(bf), br])[None, :], width))
    b_rows.append(_pad_cols(p["b_before"][None, :], width))
    b_rows.append(_pad_cols(p["b_mid"][None, :], width))
    b_rows.append(_pad_cols(p["w_mean"].T, width))
    b_rows.append(_pad_cols(p["b_mean"][None, :], width))
    b_slab = jnp.concatenate(b_rows, 0)
    return w_slab, b_slab, tuple(w_off)


def _build_graph_slab(x, a_fwd, a_rev, pool):
    n, f = x.shape
    b = pool.shape[0]
    n2, f2 = 2 * n, 2 * f
    slab = jnp.zeros((n2 + b, n2 + f2), jnp.float32)
    slab = slab.at[:n, :n].set(a_fwd)                 # block-diag adjacency
    slab = slab.at[n:n2, n:n2].set(a_rev)
    slab = slab.at[:n, n2:n2 + f].set(x)              # block-structured node features
    slab = slab.at[n:n2, n2 + f:n2 + f2].set(x)
    slab = slab.at[n2:, :n].set(pool)                 # [pool | pool]
    slab = slab.at[n2:, n:n2].set(pool)
    return slab.astype(jnp.bfloat16)


# ----------------------------------------------------------------------------- wrapper

def fr_gin_predictor_forward(x, a_fwd, a_rev, pool, p, *, hidden, enc, dec):
    n, f_in = x.shape
    b = pool.shape[0]
    graph_slab = _build_graph_slab(x, a_fwd, a_rev, pool)
    w_slab, b_slab, w_off = _build_slabs(p, hidden, enc, dec)
    kernel = functools.partial(
        _predictor_kernel,
        n=n, f_in=f_in, hidden=hidden, enc=enc, dec=dec, n_graphs=b, w_off=w_off)
    vmem = pl.BlockSpec(memory_space=pltpu.MemorySpace.VMEM)
    # grid=() single invocation: shapes are tiny and fully VMEM-resident (3 DMAs total).
    return pl.pallas_call(
        kernel,
        out_shape=jax.ShapeDtypeStruct((b, 1), jnp.float32),
        in_specs=[vmem, vmem, vmem],
        out_specs=vmem,
    )(graph_slab, w_slab, b_slab)


# ----------------------------------------------------------------------------- reference / data

def _reference_forward(x, a_fwd, a_rev, pool, p):
    """Pure-JAX f32 reference mirroring FRGinPredictorAgentAfter.forward_batch (eval mode)."""
    def gin(adj, layers):
        h = x
        for wa, ba, wb, bb in layers:
            agg = h + adj @ h
            h = jax.nn.relu(agg @ wa + ba)
            h = jax.nn.relu(h @ wb + bb)
        return pool @ h
    emb = jnp.concatenate([gin(a_fwd, p["fwd"]), gin(a_rev, p["rev"])], axis=1)
    h = jax.nn.relu(emb @ p["w_before"] + p["b_before"])
    h = jax.nn.relu(h @ p["w_mid"] + p["b_mid"])
    return jax.nn.sigmoid(h @ p["w_mean"] + p["b_mean"])     # dropout is identity in eval


def _init_params(key, f_in, hidden, enc, dec):
    keys = iter(jax.random.split(key, 64))

    def lin(din, dout, scale=0.1):
        w = scale * jax.random.normal(next(keys), (din, dout), jnp.float32)
        b = scale * jax.random.normal(next(keys), (dout,), jnp.float32)
        return w, b

    def encoder():
        layers = []
        for din, dmid, dout in ((f_in, hidden, hidden), (hidden, hidden, enc)):
            wa, ba = lin(din, dmid)
            wb, bb = lin(dmid, dout)
            layers.append((wa, ba, wb, bb))
        return layers

    p = {"fwd": encoder(), "rev": encoder()}
    p["w_before"], p["b_before"] = lin(2 * enc, 2 * dec)
    p["w_mid"], p["b_mid"] = lin(2 * dec, dec)
    p["w_mean"], p["b_mean"] = lin(dec, 1)
    return p


def _build_graph(key, n_nodes, n_feat, batch):
    """Small deterministic batched graph: a chain inside each graph segment."""
    x = jax.random.normal(key, (n_nodes, n_feat), jnp.float32)
    src, dst = [], []
    for i in range(n_nodes - 1):
        if batch[i] == batch[i + 1]:
            src.append(i)
            dst.append(i + 1)
    edge_index = jnp.array([src, dst], dtype=jnp.int32)       # [2, E], PyG convention
    a_fwd = jnp.zeros((n_nodes, n_nodes), jnp.float32).at[edge_index[1], edge_index[0]].set(1.0)
    a_rev = a_fwd.T                                           # reverse_edge_idx = edge_index[[1, 0]]
    batch_arr = jnp.array(batch, jnp.int32)
    n_graphs = int(max(batch)) + 1
    onehot = (batch_arr[None, :] == jnp.arange(n_graphs, dtype=jnp.int32)[:, None]).astype(jnp.float32)
    pool = onehot / jnp.sum(onehot, axis=1, keepdims=True)    # global_mean_pool as dense [B, N]
    return x, a_fwd, a_rev, pool


if __name__ == "__main__":
    # shapes consistent with the module: encoder_dim=32, decoder_dim=16
    N_NODES, N_FEAT, HIDDEN, ENC_DIM, DEC_DIM = 16, 8, 32, 32, 16
    BATCH = [0] * 8 + [1] * 8                                  # 2 graphs of 8 nodes

    root = jax.random.PRNGKey(0)
    k_graph, k_params = jax.random.split(root)

    x, a_fwd, a_rev, pool = _build_graph(k_graph, N_NODES, N_FEAT, BATCH)
    params = _init_params(k_params, N_FEAT, HIDDEN, ENC_DIM, DEC_DIM)

    out = fr_gin_predictor_forward(x, a_fwd, a_rev, pool, params,
                                   hidden=HIDDEN, enc=ENC_DIM, dec=DEC_DIM)
    out = jax.block_until_ready(out)
    ref = _reference_forward(x, a_fwd, a_rev, pool, params)

    assert out.shape == (2, 1) and out.dtype == jnp.float32
    assert bool(jnp.all((out >= 0.0) & (out <= 1.0)))
    # bf16 operands with f32 accumulation: expect small deviation from the f32 reference.
    assert float(jnp.max(jnp.abs(out - ref))) < 2e-2, (out, ref)
    print("KERNEL_OK")
</pallas_src>

<mosaic_0001>
module attributes {stable_mosaic.version = 11 : i64} {
  func.func @_predictor_kernel(%arg0: memref<34x48xbf16, #tpu.memory_space<vmem>>, %arg1: memref<304x64xbf16, #tpu.memory_space<vmem>>, %arg2: memref<12x64xf32, #tpu.memory_space<vmem>>, %arg3: memref<2x1xf32, #tpu.memory_space<vmem>>) attributes {dimension_semantics = [], scalar_prefetch = 0 : i64, scratch_operands = 0 : i64, tpu.core_type = #tpu.core_type<tc>} {
    %c0 = arith.constant 0 : index
    %c0_0 = arith.constant 0 : index
    %0 = vector.load %arg0[%c0, %c0_0] : memref<34x48xbf16, #tpu.memory_space<vmem>>, vector<34x48xbf16>
    %1 = vector.extract_strided_slice %0 {offsets = [0, 0], sizes = [32, 32], strides = [1, 1]} : vector<34x48xbf16> to vector<32x32xbf16>
    %2 = vector.extract_strided_slice %0 {offsets = [0, 32], sizes = [32, 16], strides = [1, 1]} : vector<34x48xbf16> to vector<32x16xbf16>
    %3 = vector.extract_strided_slice %0 {offsets = [32, 0], sizes = [2, 32], strides = [1, 1]} : vector<34x48xbf16> to vector<2x32xbf16>
    %c0_1 = arith.constant 0 : index
    %c0_2 = arith.constant 0 : index
    %4 = vector.load %arg1[%c0_1, %c0_2] : memref<304x64xbf16, #tpu.memory_space<vmem>>, vector<304x64xbf16>
    %c0_3 = arith.constant 0 : index
    %c0_4 = arith.constant 0 : index
    %5 = vector.load %arg2[%c0_3, %c0_4] : memref<12x64xf32, #tpu.memory_space<vmem>>, vector<12x64xf32>
    %6 = tpu.iota {dimensions = array<i32: 0>} : vector<32x1xi32>
    %c16_i32 = arith.constant 16 : i32
    %7 = vector.broadcast %c16_i32 : i32 to vector<32x1xi32>
    %8 = arith.cmpi slt, %6, %7 : vector<32x1xi32>
    %9 = arith.extf %2 : vector<32x16xbf16> to vector<32x16xf32>
    %cst = arith.constant dense<0.000000e+00> : vector<32x16xf32>
    %10 = tpu.matmul %1, %2, %cst {dimension_numbers = #tpu.dot_dimension_numbers<[1], [0], [0], [1], [0, 0, 1, 1], [], []>} : vector<32x32xbf16>, vector<32x16xbf16>, vector<32x16xf32> -> vector<32x16xf32>
    %11 = arith.addf %9, %10 : vector<32x16xf32>
    %12 = arith.truncf %11 : vector<32x16xf32> to vector<32x16xbf16>
    %13 = vector.extract_strided_slice %4 {offsets = [0, 0], sizes = [16, 64], strides = [1, 1]} : vector<304x64xbf16> to vector<16x64xbf16>
    %cst_5 = arith.constant dense<0.000000e+00> : vector<32x64xf32>
    %14 = tpu.matmul %12, %13, %cst_5 {dimension_numbers = #tpu.dot_dimension_numbers<[1], [0], [0], [1], [0, 0, 1, 1], [], []>} : vector<32x16xbf16>, vector<16x64xbf16>, vector<32x64xf32> -> vector<32x64xf32>
    %15 = vector.extract_strided_slice %5 {offsets = [0, 0], sizes = [1, 64], strides = [1, 1]} : vector<12x64xf32> to vector<1x64xf32>
    %16 = vector.extract_strided_slice %5 {offsets = [1, 0], sizes = [1, 64], strides = [1, 1]} : vector<12x64xf32> to vector<1x64xf32>
    %17 = vector.shape_cast %8 : vector<32x1xi1> to vector<32x1xi1>
    %18 = vector.broadcast %17 : vector<32x1xi1> to vector<32x64xi1>
    %19 = vector.shape_cast %15 : vector<1x64xf32> to vector<1x64xf32>
    %20 = vector.broadcast %19 : vector<1x64xf32> to vector<32x64xf32>
    %21 = vector.shape_cast %16 : vector<1x64xf32> to vector<1x64xf32>
    %22 = vector.broadcast %21 : vector<1x64xf32> to vector<32x64xf32>
    %23 = arith.select %18, %20, %22 : vector<32x64xi1>, vector<32x64xf32>
    %24 = arith.addf %14, %23 : vector<32x64xf32>
    %cst_6 = arith.constant 0.000000e+00 : f32
    %25 = vector.broadcast %cst_6 : f32 to vector<32x64xf32>
    %26 = arith.maximumf %24, %25 : vector<32x64xf32>
    %27 = arith.truncf %26 : vector<32x64xf32> to vector<32x64xbf16>
    %28 = vector.extract_strided_slice %4 {offsets = [16, 0], sizes = [64, 64], strides = [1, 1]} : vector<304x64xbf16> to vector<64x64xbf16>
    %cst_7 = arith.constant dense<0.000000e+00> : vector<32x64xf32>
    %29 = tpu.matmul %27, %28, %cst_7 {dimension_numbers = #tpu.dot_dimension_numbers<[1], [0], [0], [1], [0, 0, 1, 1], [], []>} : vector<32x64xbf16>, vector<64x64xbf16>, vector<32x64xf32> -> vector<32x64xf32>
    %30 = vector.extract_strided_slice %5 {offsets = [2, 0], sizes = [1, 64], strides = [1, 1]} : vector<12x64xf32> to vector<1x64xf32>
    %31 = vector.extract_strided_slice %5 {offsets = [3, 0], sizes = [1, 64], strides = [1, 1]} : vector<12x64xf32> to vector<1x64xf32>
    %32 = vector.shape_cast %8 : vector<32x1xi1> to vector<32x1xi1>
    %33 = vector.broadcast %32 : vector<32x1xi1> to vector<32x64xi1>
    %34 = vector.shape_cast %30 : vector<1x64xf32> to vector<1x64xf32>
    %35 = vector.broadcast %34 : vector<1x64xf32> to vector<32x64xf32>
    %36 = vector.shape_cast %31 : vector<1x64xf32> to vector<1x64xf32>
    %37 = vector.broadcast %36 : vector<1x64xf32> to vector<32x64xf32>
    %38 = arith.select %33, %35, %37 : vector<32x64xi1>, vector<32x64xf32>
    %39 = arith.addf %29, %38 : vector<32x64xf32>
    %cst_8 = arith.constant 0.000000e+00 : f32
    %40 = vector.broadcast %cst_8 : f32 to vector<32x64xf32>
    %41 = arith.maximumf %39, %40 : vector<32x64xf32>
    %42 = arith.truncf %41 : vector<32x64xf32> to vector<32x64xbf16>
    %43 = arith.extf %42 : vector<32x64xbf16> to vector<32x64xf32>
    %cst_9 = arith.constant dense<0.000000e+00> : vector<32x64xf32>
    %44 = tpu.matmul %1, %42, %cst_9 {dimension_numbers = #tpu.dot_dimension_numbers<[1], [0], [0], [1], [0, 0, 1, 1], [], []>} : vector<32x32xbf16>, vector<32x64xbf16>, vector<32x64xf32> -> vector<32x64xf32>
    %45 = arith.addf %43, %44 : vector<32x64xf32>
    %46 = arith.truncf %45 : vector<32x64xf32> to vector<32x64xbf16>
    %47 = vector.extract_strided_slice %4 {offsets = [80, 0], sizes = [64, 64], strides = [1, 1]} : vector<304x64xbf16> to vector<64x64xbf16>
    %cst_10 = arith.constant dense<0.000000e+00> : vector<32x64xf32>
    %48 = tpu.matmul %46, %47, %cst_10 {dimension_numbers = #tpu.dot_dimension_numbers<[1], [0], [0], [1], [0, 0, 1, 1], [], []>} : vector<32x64xbf16>, vector<64x64xbf16>, vector<32x64xf32> -> vector<32x64xf32>
    %49 = vector.extract_strided_slice %5 {offsets = [4, 0], sizes = [1, 64], strides = [1, 1]} : vector<12x64xf32> to vector<1x64xf32>
    %50 = vector.extract_strided_slice %5 {offsets = [5, 0], sizes = [1, 64], strides = [1, 1]} : vector<12x64xf32> to vector<1x64xf32>
    %51 = vector.shape_cast %8 : vector<32x1xi1> to vector<32x1xi1>
    %52 = vector.broadcast %51 : vector<32x1xi1> to vector<32x64xi1>
    %53 = vector.shape_cast %49 : vector<1x64xf32> to vector<1x64xf32>
    %54 = vector.broadcast %53 : vector<1x64xf32> to vector<32x64xf32>
    %55 = vector.shape_cast %50 : vector<1x64xf32> to vector<1x64xf32>
    %56 = vector.broadcast %55 : vector<1x64xf32> to vector<32x64xf32>
    %57 = arith.select %52, %54, %56 : vector<32x64xi1>, vector<32x64xf32>
    %58 = arith.addf %48, %57 : vector<32x64xf32>
    %cst_11 = arith.constant 0.000000e+00 : f32
    %59 = vector.broadcast %cst_11 : f32 to vector<32x64xf32>
    %60 = arith.maximumf %58, %59 : vector<32x64xf32>
    %61 = arith.truncf %60 : vector<32x64xf32> to vector<32x64xbf16>
    %62 = vector.extract_strided_slice %4 {offsets = [144, 0], sizes = [64, 64], strides = [1, 1]} : vector<304x64xbf16> to vector<64x64xbf16>
    %cst_12 = arith.constant dense<0.000000e+00> : vector<32x64xf32>
    %63 = tpu.matmul %61, %62, %cst_12 {dimension_numbers = #tpu.dot_dimension_numbers<[1], [0], [0], [1], [0, 0, 1, 1], [], []>} : vector<32x64xbf16>, vector<64x64xbf16>, vector<32x64xf32> -> vector<32x64xf32>
    %64 = vector.extract_strided_slice %5 {offsets = [6, 0], sizes = [1, 64], strides = [1, 1]} : vector<12x64xf32> to vector<1x64xf32>
    %65 = vector.extract_strided_slice %5 {offsets = [7, 0], sizes = [1, 64], strides = [1, 1]} : vector<12x64xf32> to vector<1x64xf32>
    %66 = vector.shape_cast %8 : vector<32x1xi1> to vector<32x1xi1>
    %67 = vector.broadcast %66 : vector<32x1xi1> to vector<32x64xi1>
    %68 = vector.shape_cast %64 : vector<1x64xf32> to vector<1x64xf32>
    %69 = vector.broadcast %68 : vector<1x64xf32> to vector<32x64xf32>
    %70 = vector.shape_cast %65 : vector<1x64xf32> to vector<1x64xf32>
    %71 = vector.broadcast %70 : vector<1x64xf32> to vector<32x64xf32>
    %72 = arith.select %67, %69, %71 : vector<32x64xi1>, vector<32x64xf32>
    %73 = arith.addf %63, %72 : vector<32x64xf32>
    %cst_13 = arith.constant 0.000000e+00 : f32
    %74 = vector.broadcast %cst_13 : f32 to vector<32x64xf32>
    %75 = arith.maximumf %73, %74 : vector<32x64xf32>
    %76 = arith.truncf %75 : vector<32x64xf32> to vector<32x64xbf16>
    %cst_14 = arith.constant dense<0.000000e+00> : vector<2x64xf32>
    %77 = tpu.matmul %3, %76, %cst_14 {dimension_numbers = #tpu.dot_dimension_numbers<[1], [0], [0], [1], [0, 0, 1, 1], [], []>} : vector<2x32xbf16>, vector<32x64xbf16>, vector<2x64xf32> -> vector<2x64xf32>
    %78 = arith.truncf %77 : vector<2x64xf32> to vector<2x64xbf16>
    %79 = vector.extract_strided_slice %4 {offsets = [208, 0], sizes = [64, 32], strides = [1, 1]} : vector<304x64xbf16> to vector<64x32xbf16>
    %cst_15 = arith.constant dense<0.000000e+00> : vector<2x32xf32>
    %80 = tpu.matmul %78, %79, %cst_15 {dimension_numbers = #tpu.dot_dimension_numbers<[1], [0], [0], [1], [0, 0, 1, 1], [], []>} : vector<2x64xbf16>, vector<64x32xbf16>, vector<2x32xf32> -> vector<2x32xf32>
    %81 = vector.extract_strided_slice %5 {offsets = [8, 0], sizes = [1, 32], strides = [1, 1]} : vector<12x64xf32> to vector<1x32xf32>
    %82 = vector.broadcast %81 : vector<1x32xf32> to vector<2x32xf32>
    %83 = arith.addf %80, %82 : vector<2x32xf32>
    %cst_16 = arith.constant 0.000000e+00 : f32
    %84 = vector.broadcast %cst_16 : f32 to vector<2x32xf32>
    %85 = arith.maximumf %83, %84 : vector<2x32xf32>
    %86 = arith.truncf %85 : vector<2x32xf32> to vector<2x32xbf16>
    %87 = vector.extract_strided_slice %4 {offsets = [272, 0], sizes = [32, 16], strides = [1, 1]} : vector<304x64xbf16> to vector<32x16xbf16>
    %cst_17 = arith.constant dense<0.000000e+00> : vector<2x16xf32>
    %88 = tpu.matmul %86, %87, %cst_17 {dimension_numbers = #tpu.dot_dimension_numbers<[1], [0], [0], [1], [0, 0, 1, 1], [], []>} : vector<2x32xbf16>, vector<32x16xbf16>, vector<2x16xf32> -> vector<2x16xf32>
    %89 = vector.extract_strided_slice %5 {offsets = [9, 0], sizes = [1, 16], strides = [1, 1]} : vector<12x64xf32> to vector<1x16xf32>
    %90 = vector.broadcast %89 : vector<1x16xf32> to vector<2x16xf32>
    %91 = arith.addf %88, %90 : vector<2x16xf32>
    %cst_18 = arith.constant 0.000000e+00 : f32
    %92 = vector.broadcast %cst_18 : f32 to vector<2x16xf32>
    %93 = arith.maximumf %91, %92 : vector<2x16xf32>
    %94 = vector.extract_strided_slice %5 {offsets = [10, 0], sizes = [1, 16], strides = [1, 1]} : vector<12x64xf32> to vector<1x16xf32>
    %95 = vector.extract_strided_slice %5 {offsets = [11, 0], sizes = [1, 1], strides = [1, 1]} : vector<12x64xf32> to vector<1x1xf32>
    %96 = vector.broadcast %94 : vector<1x16xf32> to vector<2x16xf32>
    %97 = arith.mulf %93, %96 : vector<2x16xf32>
    %cst_19 = arith.constant dense<0.000000e+00> : vector<2xf32>
    %98 = vector.multi_reduction <add>, %97, %cst_19 [1] : vector<2x16xf32> to vector<2xf32>
    %99 = vector.shape_cast %98 : vector<2xf32> to vector<2x1xf32>
    %100 = vector.broadcast %95 : vector<1x1xf32> to vector<2x1xf32>
    %101 = arith.addf %99, %100 : vector<2x1xf32>
    %102 = arith.negf %101 : vector<2x1xf32>
    %103 = math.exp %102 : vector<2x1xf32>
    %cst_20 = arith.constant 1.000000e+00 : f32
    %104 = vector.broadcast %cst_20 : f32 to vector<2x1xf32>
    %105 = arith.addf %104, %103 : vector<2x1xf32>
    %106 = arith.divf %104, %105 : vector<2x1xf32>
    %c0_21 = arith.constant 0 : index
    %c0_22 = arith.constant 0 : index
    %107 = vector.load %arg3[%c0_21, %c0_22] : memref<2x1xf32, #tpu.memory_space<vmem>>, vector<2x1xf32>
    tpu.vector_store %arg3[%c0_21, %c0_22], %106 {strides = array<i32>} : memref<2x1xf32, #tpu.memory_space<vmem>>, vector<2x1xf32>,
    return
  }
}

</mosaic_0001>

<llo_original>
// kernel: tpu_custom_call.1
$region0: #{tpu_custom_call.1}
  #allocation0 [shape = 'u32[]', space=smem, size = 0x4, offset = 0x4, fixed_abs, tag = 'smem constant byte address 0x4 - core index']
  #allocation1 [shape = 'u32[144,128]{1,0:T(1,128)}', space=vmem, size = 0x12000, scoped, tag = 'internal scratch']
  %s0 = inlined_call_operand.vmem [shape: bf16[34,48], index: 0, kind: input, shape index: {}]
  %s1 = inlined_call_operand.vmem [shape: bf16[304,64], index: 1, kind: input, shape index: {}]
  %s2 = inlined_call_operand.vmem [shape: f32[12,64], index: 2, kind: input, shape index: {}]
  %s3 = inlined_call_operand.vmem [shape: f32[2,1], index: 3, kind: output, shape index: {}]
  %s4 = sld [smem:[#allocation0]]
  $region22: #{tpu_custom_call.1} parent=0
    _
  %s6 = ssub.s32 1, %s4
  %s7 = scalar_select 0, %s6, %s4
  // Predicated region
  $region2: #{tpu_custom_call.1} parent=0 // pred_check
    _
  $region3: #{tpu_custom_call.1} parent=0 // pred_check_branch
    %9 = sbr.rel (0) target = $region5
  $region4: #{tpu_custom_call.1} parent=0 // pred_region
    _
  $region5: #{tpu_custom_call.1} parent=0 // pred_fallthru
    _
  // Predicated region
  $region6: #{tpu_custom_call.1} parent=0 // pred_check
    _
  $region7: #{tpu_custom_call.1} parent=0 // pred_check_branch
    %11 = sbr.rel (0) target = $region9
  $region8: #{tpu_custom_call.1} parent=0 // pred_region
    _
  $region9: #{tpu_custom_call.1} parent=0 // pred_fallthru
    _
  // Predicated region
  $region10: #{tpu_custom_call.1} parent=0 // pred_check
    _
  $region11: #{tpu_custom_call.1} parent=0 // pred_check_branch
    %13 = sbr.rel (0) target = $region13
  $region12: #{tpu_custom_call.1} parent=0 // pred_region
    _
  $region13: #{tpu_custom_call.1} parent=0 // pred_fallthru
    _
  %v15 = vld [vmem:[%s0] sm:$0xf]
  %v16 = vld [vmem:[%s0 + $0x4] sm:$0xf]
  %v17 = vld [vmem:[%s0 + $0x8] sm:$0xf]
  %v18 = vld [vmem:[%s0 + $0xc] sm:$0xf]
  %v19 = vld [vmem:[%s0 + $0x10] sm:$0x1]
  %v20 = vld [vmem:[%s1] sm:$0xf]
  %v21 = vld [vmem:[%s1 + $0x4] sm:$0xf]
  %v22 = vld [vmem:[%s1 + $0x8] sm:$0xf]
  %v23 = vld [vmem:[%s1 + $0xc] sm:$0xf]
  %v24 = vld [vmem:[%s1 + $0x10] sm:$0xf]
  %v25 = vld [vmem:[%s1 + $0x14] sm:$0xf]
  %v26 = vld [vmem:[%s1 + $0x18] sm:$0xf]
  %v27 = vld [vmem:[%s1 + $0x1c] sm:$0xf]
  %v28 = vld [vmem:[%s1 + $0x20] sm:$0xf]
  %v29 = vld [vmem:[%s1 + $0x24] sm:$0xf]
  %v30 = vld [vmem:[%s1 + $0x28] sm:$0xf]
  %v31 = vld [vmem:[%s1 + $0x2c] sm:$0xf]
  %v32 = vld [vmem:[%s1 + $0x30] sm:$0xf]
  %v33 = vld [vmem:[%s1 + $0x34] sm:$0xf]
  %v34 = vld [vmem:[%s1 + $0x38] sm:$0xf]
  %v35 = vld [vmem:[%s1 + $0x3c] sm:$0xf]
  %v36 = vld [vmem:[%s1 + $0x40] sm:$0xf]
  %v37 = vld [vmem:[%s1 + $0x44] sm:$0xf]
  %v38 = vld [vmem:[%s1 + $0x48] sm:$0xf]
  %v39 = vld [vmem:[%s1 + $0x4c] sm:$0xf]
  %v40 = vld [vmem:[%s1 + $0x50] sm:$0xf]
  %v41 = vld [vmem:[%s1 + $0x54] sm:$0xf]
  %v42 = vld [vmem:[%s1 + $0x58] sm:$0xf]
  %v43 = vld [vmem:[%s1 + $0x5c] sm:$0xf]
  %v44 = vld [vmem:[%s1 + $0x60] sm:$0xf]
  %v45 = vld [vmem:[%s1 + $0x64] sm:$0xf]
  %v46 = vld [vmem:[%s1 + $0x68] sm:$0xf]
  %v47 = vld [vmem:[%s1 + $0x6c] sm:$0xf]
  %v48 = vld [vmem:[%s1 + $0x70] sm:$0xf]
  %v49 = vld [vmem:[%s1 + $0x74] sm:$0xf]
  %v50 = vld [vmem:[%s1 + $0x78] sm:$0xf]
  %v51 = vld [vmem:[%s1 + $0x7c] sm:$0xf]
  %v52 = vld [vmem:[%s1 + $0x80] sm:$0xf]
  %v53 = vld [vmem:[%s1 + $0x84] sm:$0xf]
  %v54 = vld [vmem:[%s1 + $0x88] sm:$0xf]
  %v55 = vld [vmem:[%s1 + $0x8c] sm:$0xf]
  %v56 = vld [vmem:[%s1 + $0x90] sm:$0xf]
  %v57 = vld [vmem:[%s1 + $0x94] sm:$0xf]
  %v58 = vld [vmem:[%s2] sm:$0xff]
  %v59 = vld [vmem:[%s2 + $0x8] sm:$0xf]
  %v60 = vlaneseq
  %v61 = vshrl.u32 %v60, 7
  %v62 = vadd.s32 %v61, 8
  %v63 = vadd.s32 %v61, 16
  %v64 = vadd.s32 %v61, 24
  %vm65 = vcmp.lt.s32.totalorder %v61, 16
  %vm66 = vcmp.lt.s32.totalorder %v62, 16
  %vm67 = vcmp.lt.s32.totalorder %v63, 16
  %vm68 = vcmp.lt.s32.totalorder %v64, 16
  %v69 = vunpack.c.l.bf16 %v15
  %v70 = vunpack.c.l.bf16 %v16
  %v71 = vunpack.c.l.bf16 %v17
  %v72 = vunpack.c.l.bf16 %v18
  %v77 = vunpack.c.l.b16 %v15
  %v78 = vunpack.c.l.b16 %v16
  %v79 = vunpack.c.l.b16 %v17
  %v80 = vunpack.c.l.b16 %v18
  %v81 = vpack.c.b16 %v78, %v77
  %v82 = vpack.c.b16 %v80, %v79
  %83 = vrot.lane.b32.xlu0 %v81, 96
  %v84 = vpop.permute.xlu0 %83
  %85 = vrot.lane.b32.xlu0 %v82, 96
  %v86 = vpop.permute.xlu0 %85
  %vm89 = vcmask 261120
  %v91 = vsel %vm89, %v81, 0
  %v94 = vsel %vm89, %v82, 0
  %96 = vmatprep.subr.bf16.mxu0 0
  %97 = vmatpush1.bf16.msra.mxu0 0
  %98 = vmatprep.subr.bf16.mxu0 0
  %99 = vmatpush1.bf16.msra.mxu0 0
  %100 = vmatprep.subr.bf16.mxu0 0
  %101 = vmatpush1.bf16.msra.mxu0 0
  %102 = vmatprep.subr.bf16.mxu0 0
  %103 = vmatpush1.bf16.msra.mxu0 0
  %104 = vmatprep.subr.bf16.mxu0 0
  %105 = vmatpush1.bf16.msra.mxu0 0
  %106 = vmatprep.subr.bf16.mxu0 0
  %107 = vmatpush1.bf16.msra.mxu0 0
  %108 = vmatprep.subr.bf16.mxu0 0
  %109 = vmatpush1.bf16.msra.mxu0 %v86
  %110 = vmatprep.subr.bf16.mxu0 0
  %111 = vmatpush1.bf16.msra.mxu0 %v84
  %112 = vmatprep.subr.bf16.mxu0 0
  %113 = vmatpush2.bf16.msra.mxu0 0
  %114 = vmatprep.subr.bf16.mxu0 0
  %115 = vmatpush2.bf16.msra.mxu0 0
  %116 = vmatprep.subr.bf16.mxu0 0
  %117 = vmatpush2.bf16.msra.mxu0 0
  %118 = vmatprep.subr.bf16.mxu0 0
  %119 = vmatpush2.bf16.msra.mxu0 0
  %120 = vmatprep.subr.bf16.mxu0 0
  %121 = vmatpush2.bf16.msra.mxu0 0
  %122 = vmatprep.subr.bf16.mxu0 0
  %123 = vmatpush2.bf16.msra.mxu0 0
  %124 = vmatprep.subr.bf16.mxu0 0
  %125 = vmatpush2.bf16.msra.mxu0 0
  %126 = vmatprep.subr.bf16.mxu0 0
  %127 = vmatpush2.bf16.msra.mxu0 0
  %128 = vmatprep.mubr.bf16.mxu0 0
  %129 = vmatmul.mubr.bf16.gmra.mxu0 %v91
  %v130 = vpop.f32.mrf.mxu0
  %v131 = vadd.f32 0.0, %v130
  %v132 = vpop.f32.mrf.mxu0
  %v133 = vpop.f32.mrf.mxu0
  %v134 = vadd.f32 0.0, %v133
  %v135 = vpop.f32.mrf.mxu0
  %136 = vmatprep.mubr.bf16.mxu0 0
  %137 = vmatmul.mubr.bf16.gmra.mxu0 %v94
  %v138 = vpop.f32.mrf.mxu0
  %v139 = vadd.f32 0.0, %v138
  %v140 = vpop.f32.mrf.mxu0
  %v141 = vpop.f32.mrf.mxu0
  %v142 = vadd.f32 0.0, %v141
  %v143 = vpop.f32.mrf.mxu0
  %144 = vdwg.mxu0
  %149 = vrot.lane.b32.xlu0 %v131, 32
  %v150 = vpop.permute.xlu0 %149
  %151 = vrot.lane.b32.xlu0 %v134, 32
  %v152 = vpop.permute.xlu0 %151
  %153 = vrot.lane.b32.xlu0 %v139, 32
  %v154 = vpop.permute.xlu0 %153
  %155 = vrot.lane.b32.xlu0 %v142, 32
  %v156 = vpop.permute.xlu0 %155
  %v161 = vadd.f32 %v69, %v150
  %v162 = vadd.f32 %v70, %v152
  %v163 = vadd.f32 %v71, %v154
  %v164 = vadd.f32 %v72, %v156
  %v165 = vpack.c.bf16 %v162, %v161
  %v166 = vpack.c.bf16 %v164, %v163
  %v167 = vsel %vm65, 1, 0
  %v168 = vsel %vm66, 1, 0
  %v169 = vsel %vm67, 1, 0
  %v170 = vsel %vm68, 1, 0
  %vm171 = vcmp.eq.s32.totalorder %v167, 1
  %vm172 = vcmp.eq.s32.totalorder %v168, 1
  %vm173 = vcmp.eq.s32.totalorder %v169, 1
  %vm174 = vcmp.eq.s32.totalorder %v170, 1
  %v175 = vlaneseq
  %v176 = vshrl.u32 %v175, 7
  %v177 = vsub.s32 0, %v176
  %v178 = vrot.slane %v58, %v177
  %v179 = vlaneseq
  %v180 = vshrl.u32 %v179, 7
  %v181 = vsub.s32 1, %v180
  %v182 = vrot.slane %v58, %v181
  %v183 = vsel %vm171, %v178, %v182
  %v184 = vsel %vm172, %v178, %v182
  %v185 = vsel %vm173, %v178, %v182
  %v186 = vsel %vm174, %v178, %v182
  %189 = vrot.lane.b32.xlu0 %v165, 96
  %v190 = vpop.permute.xlu0 %189
  %191 = vrot.lane.b32.xlu0 %v166, 96
  %v192 = vpop.permute.xlu0 %191
  %v195 = vunpack.c.l.b16 %v20
  %v196 = vunpack.c.l.b16 %v21
  %v197 = vpack.c.b16 %v196, %v195
  %vm199 = vcmask 130048
  %v201 = vsel %vm199, %v190, 0
  %v204 = vsel %vm199, %v192, 0
  %206 = vmatprep.subr.bf16.mxu0 0
  %207 = vmatpush1.bf16.msra.mxu0 0
  %208 = vmatprep.subr.bf16.mxu0 0
  %209 = vmatpush1.bf16.msra.mxu0 0
  %210 = vmatprep.subr.bf16.mxu0 0
  %211 = vmatpush1.bf16.msra.mxu0 0
  %212 = vmatprep.subr.bf16.mxu0 0
  %213 = vmatpush1.bf16.msra.mxu0 0
  %214 = vmatprep.subr.bf16.mxu0 0
  %215 = vmatpush1.bf16.msra.mxu0 0
  %216 = vmatprep.subr.bf16.mxu0 0
  %217 = vmatpush1.bf16.msra.mxu0 0
  %218 = vmatprep.subr.bf16.mxu0 0
  %219 = vmatpush1.bf16.msra.mxu0 0
  %220 = vmatprep.subr.bf16.mxu0 0
  %221 = vmatpush1.bf16.msra.mxu0 %v197
  %222 = vmatprep.subr.bf16.mxu0 0
  %223 = vmatpush2.bf16.msra.mxu0 0
  %224 = vmatprep.subr.bf16.mxu0 0
  %225 = vmatpush2.bf16.msra.mxu0 0
  %226 = vmatprep.subr.bf16.mxu0 0
  %227 = vmatpush2.bf16.msra.mxu0 0
  %228 = vmatprep.subr.bf16.mxu0 0
  %229 = vmatpush2.bf16.msra.mxu0 0
  %230 = vmatprep.subr.bf16.mxu0 0
  %231 = vmatpush2.bf16.msra.mxu0 0
  %232 = vmatprep.subr.bf16.mxu0 0
  %233 = vmatpush2.bf16.msra.mxu0 0
  %234 = vmatprep.subr.bf16.mxu0 0
  %235 = vmatpush2.bf16.msra.mxu0 0
  %236 = vmatprep.subr.bf16.mxu0 0
  %237 = vmatpush2.bf16.msra.mxu0 0
  %238 = vmatprep.mubr.bf16.mxu0 0
  %239 = vmatmul.mubr.bf16.gmra.mxu0 %v201
  %v240 = vpop.f32.mrf.mxu0
  %v241 = vadd.f32 %v183, %v240
  %v242 = vpop.f32.mrf.mxu0
  %v243 = vpop.f32.mrf.mxu0
  %v244 = vadd.f32 %v184, %v243
  %v245 = vpop.f32.mrf.mxu0
  %246 = vmatprep.mubr.bf16.mxu0 0
  %247 = vmatmul.mubr.bf16.gmra.mxu0 %v204
  %v248 = vpop.f32.mrf.mxu0
  %v249 = vadd.f32 %v185, %v248
  %v250 = vpop.f32.mrf.mxu0
  %v251 = vpop.f32.mrf.mxu0
  %v252 = vadd.f32 %v186, %v251
  %v253 = vpop.f32.mrf.mxu0
  %254 = vdwg.mxu0
  %v255 = vmax.f32 %v241, 0.0
  %v256 = vmax.f32 %v244, 0.0
  %v257 = vmax.f32 %v249, 0.0
  %v258 = vmax.f32 %v252, 0.0
  %v259 = vpack.c.bf16 %v256, %v255
  %v260 = vpack.c.bf16 %v258, %v257
  %v261 = vlaneseq
  %v262 = vshrl.u32 %v261, 7
  %v263 = vsub.s32 2, %v262
  %v264 = vrot.slane %v58, %v263
  %v265 = vlaneseq
  %v266 = vshrl.u32 %v265, 7
  %v267 = vsub.s32 3, %v266
  %v268 = vrot.slane %v58, %v267
  %v269 = vsel %vm171, %v264, %v268
  %v270 = vsel %vm172, %v264, %v268
  %v271 = vsel %vm173, %v264, %v268
  %v272 = vsel %vm174, %v264, %v268
  %v281 = vunpack.c.l.b16 %v22
  %v282 = vunpack.c.l.b16 %v23
  %v283 = vunpack.c.l.b16 %v24
  %v284 = vunpack.c.l.b16 %v25
  %v285 = vunpack.c.l.b16 %v26
  %v286 = vunpack.c.l.b16 %v27
  %v287 = vunpack.c.l.b16 %v28
  %v288 = vunpack.c.l.b16 %v29
  %v289 = vpack.c.b16 %v282, %v281
  %v290 = vpack.c.b16 %v284, %v283
  %v291 = vpack.c.b16 %v286, %v285
  %v292 = vpack.c.b16 %v288, %v287
  %vm297 = vcmask 523264
  %v299 = vsel %vm297, %v259, 0
  %v302 = vsel %vm297, %v260, 0
  %304 = vmatprep.subr.bf16.mxu0 0
  %305 = vmatpush1.bf16.msra.mxu0 0
  %306 = vmatprep.subr.bf16.mxu0 0
  %307 = vmatpush1.bf16.msra.mxu0 0
  %308 = vmatprep.subr.bf16.mxu0 0
  %309 = vmatpush1.bf16.msra.mxu0 0
  %310 = vmatprep.subr.bf16.mxu0 0
  %311 = vmatpush1.bf16.msra.mxu0 0
  %312 = vmatprep.subr.bf16.mxu0 0
  %313 = vmatpush1.bf16.msra.mxu0 %v292
  %314 = vmatprep.subr.bf16.mxu0 0
  %315 = vmatpush1.bf16.msra.mxu0 %v291
  %316 = vmatprep.subr.bf16.mxu0 0
  %317 = vmatpush1.bf16.msra.mxu0 %v290
  %318 = vmatprep.subr.bf16.mxu0 0
  %319 = vmatpush1.bf16.msra.mxu0 %v289
  %320 = vmatprep.subr.bf16.mxu0 0
  %321 = vmatpush2.bf16.msra.mxu0 0
  %322 = vmatprep.subr.bf16.mxu0 0
  %323 = vmatpush2.bf16.msra.mxu0 0
  %324 = vmatprep.subr.bf16.mxu0 0
  %325 = vmatpush2.bf16.msra.mxu0 0
  %326 = vmatprep.subr.bf16.mxu0 0
  %327 = vmatpush2.bf16.msra.mxu0 0
  %328 = vmatprep.subr.bf16.mxu0 0
  %329 = vmatpush2.bf16.msra.mxu0 0
  %330 = vmatprep.subr.bf16.mxu0 0
  %331 = vmatpush2.bf16.msra.mxu0 0
  %332 = vmatprep.subr.bf16.mxu0 0
  %333 = vmatpush2.bf16.msra.mxu0 0
  %334 = vmatprep.subr.bf16.mxu0 0
  %335 = vmatpush2.bf16.msra.mxu0 0
  %336 = vmatprep.mubr.bf16.mxu0 0
  %337 = vmatmul.mubr.bf16.gmra.mxu0 %v299
  %v338 = vpop.f32.mrf.mxu0
  %v339 = vadd.f32 %v269, %v338
  %v340 = vpop.f32.mrf.mxu0
  %v341 = vpop.f32.mrf.mxu0
  %v342 = vadd.f32 %v270, %v341
  %v343 = vpop.f32.mrf.mxu0
  %344 = vmatprep.mubr.bf16.mxu0 0
  %345 = vmatmul.mubr.bf16.gmra.mxu0 %v302
  %v346 = vpop.f32.mrf.mxu0
  %v347 = vadd.f32 %v271, %v346
  %v348 = vpop.f32.mrf.mxu0
  %v349 = vpop.f32.mrf.mxu0
  %v350 = vadd.f32 %v272, %v349
  %v351 = vpop.f32.mrf.mxu0
  %352 = vdwg.mxu0
  %v353 = vmax.f32 %v339, 0.0
  %v354 = vmax.f32 %v342, 0.0
  %v355 = vmax.f32 %v347, 0.0
  %v356 = vmax.f32 %v350, 0.0
  %v357 = vpack.c.bf16 %v354, %v353
  %v358 = vpack.c.bf16 %v356, %v355
  %v359 = vunpack.c.l.bf16 %v357
  %v360 = vunpack.c.h.bf16 %v357
  %v361 = vunpack.c.l.bf16 %v358
  %v362 = vunpack.c.h.bf16 %v358
  %363 = vmatprep.subr.bf16.mxu0 0
  %364 = vmatpush1.bf16.msra.mxu0 0
  %365 = vmatprep.subr.bf16.mxu0 0
  %366 = vmatpush1.bf16.msra.mxu0 0
  %367 = vmatprep.subr.bf16.mxu0 0
  %368 = vmatpush1.bf16.msra.mxu0 0
  %369 = vmatprep.subr.bf16.mxu0 0
  %370 = vmatpush1.bf16.msra.mxu0 0
  %371 = vmatprep.subr.bf16.mxu0 0
  %372 = vmatpush1.bf16.msra.mxu0 0
  %373 = vmatprep.subr.bf16.mxu0 0
  %374 = vmatpush1.bf16.msra.mxu0 0
  %375 = vmatprep.subr.bf16.mxu0 0
  %376 = vmatpush1.bf16.msra.mxu0 %v358
  %377 = vmatprep.subr.bf16.mxu0 0
  %378 = vmatpush1.bf16.msra.mxu0 %v357
  %379 = vmatprep.subr.bf16.mxu0 0
  %380 = vmatpush2.bf16.msra.mxu0 0
  %381 = vmatprep.subr.bf16.mxu0 0
  %382 = vmatpush2.bf16.msra.mxu0 0
  %383 = vmatprep.subr.bf16.mxu0 0
  %384 = vmatpush2.bf16.msra.mxu0 0
  %385 = vmatprep.subr.bf16.mxu0 0
  %386 = vmatpush2.bf16.msra.mxu0 0
  %387 = vmatprep.subr.bf16.mxu0 0
  %388 = vmatpush2.bf16.msra.mxu0 0
  %389 = vmatprep.subr.bf16.mxu0 0
  %390 = vmatpush2.bf16.msra.mxu0 0
  %391 = vmatprep.subr.bf16.mxu0 0
  %392 = vmatpush2.bf16.msra.mxu0 0
  %393 = vmatprep.subr.bf16.mxu0 0
  %394 = vmatpush2.bf16.msra.mxu0 0
  %395 = vmatprep.mubr.bf16.mxu0 0
  %396 = vmatmul.mubr.bf16.gmra.mxu0 %v91
  %v397 = vpop.f32.mrf.mxu0
  %v398 = vadd.f32 0.0, %v397
  %v399 = vpop.f32.mrf.mxu0
  %v400 = vpop.f32.mrf.mxu0
  %v401 = vadd.f32 0.0, %v400
  %v402 = vpop.f32.mrf.mxu0
  %403 = vmatprep.mubr.bf16.mxu0 0
  %404 = vmatmul.mubr.bf16.gmra.mxu0 %v94
  %v405 = vpop.f32.mrf.mxu0
  %v406 = vadd.f32 0.0, %v405
  %v407 = vpop.f32.mrf.mxu0
  %v408 = vpop.f32.mrf.mxu0
  %v409 = vadd.f32 0.0, %v408
  %v410 = vpop.f32.mrf.mxu0
  %411 = vdwg.mxu0
  %v412 = vadd.f32 %v359, %v398
  %v413 = vadd.f32 %v360, %v401
  %v414 = vadd.f32 %v361, %v406
  %v415 = vadd.f32 %v362, %v409
  %v416 = vpack.c.bf16 %v413, %v412
  %v417 = vpack.c.bf16 %v415, %v414
  %v418 = vlaneseq
  %v419 = vshrl.u32 %v418, 7
  %v420 = vsub.s32 4, %v419
  %v421 = vrot.slane %v58, %v420
  %v422 = vlaneseq
  %v423 = vshrl.u32 %v422, 7
  %v424 = vsub.s32 5, %v423
  %v425 = vrot.slane %v58, %v424
  %v426 = vsel %vm171, %v421, %v425
  %v427 = vsel %vm172, %v421, %v425
  %v428 = vsel %vm173, %v421, %v425
  %v429 = vsel %vm174, %v421, %v425
  %v438 = vunpack.c.l.b16 %v30
  %v439 = vunpack.c.l.b16 %v31
  %v440 = vunpack.c.l.b16 %v32
  %v441 = vunpack.c.l.b16 %v33
  %v442 = vunpack.c.l.b16 %v34
  %v443 = vunpack.c.l.b16 %v35
  %v444 = vunpack.c.l.b16 %v36
  %v445 = vunpack.c.l.b16 %v37
  %v446 = vpack.c.b16 %v439, %v438
  %v447 = vpack.c.b16 %v441, %v440
  %v448 = vpack.c.b16 %v443, %v442
  %v449 = vpack.c.b16 %v445, %v444
  %v455 = vsel %vm297, %v416, 0
  %v458 = vsel %vm297, %v417, 0
  %460 = vmatprep.subr.bf16.mxu0 0
  %461 = vmatpush1.bf16.msra.mxu0 0
  %462 = vmatprep.subr.bf16.mxu0 0
  %463 = vmatpush1.bf16.msra.mxu0 0
  %464 = vmatprep.subr.bf16.mxu0 0
  %465 = vmatpush1.bf16.msra.mxu0 0
  %466 = vmatprep.subr.bf16.mxu0 0
  %467 = vmatpush1.bf16.msra.mxu0 0
  %468 = vmatprep.subr.bf16.mxu0 0
  %469 = vmatpush1.bf16.msra.mxu0 %v449
  %470 = vmatprep.subr.bf16.mxu0 0
  %471 = vmatpush1.bf16.msra.mxu0 %v448
  %472 = vmatprep.subr.bf16.mxu0 0
  %473 = vmatpush1.bf16.msra.mxu0 %v447
  %474 = vmatprep.subr.bf16.mxu0 0
  %475 = vmatpush1.bf16.msra.mxu0 %v446
  %476 = vmatprep.subr.bf16.mxu0 0
  %477 = vmatpush2.bf16.msra.mxu0 0
  %478 = vmatprep.subr.bf16.mxu0 0
  %479 = vmatpush2.bf16.msra.mxu0 0
  %480 = vmatprep.subr.bf16.mxu0 0
  %481 = vmatpush2.bf16.msra.mxu0 0
  %482 = vmatprep.subr.bf16.mxu0 0
  %483 = vmatpush2.bf16.msra.mxu0 0
  %484 = vmatprep.subr.bf16.mxu0 0
  %485 = vmatpush2.bf16.msra.mxu0 0
  %486 = vmatprep.subr.bf16.mxu0 0
  %487 = vmatpush2.bf16.msra.mxu0 0
  %488 = vmatprep.subr.bf16.mxu0 0
  %489 = vmatpush2.bf16.msra.mxu0 0
  %490 = vmatprep.subr.bf16.mxu0 0
  %491 = vmatpush2.bf16.msra.mxu0 0
  %492 = vmatprep.mubr.bf16.mxu0 0
  %493 = vmatmul.mubr.bf16.gmra.mxu0 %v455
  %v494 = vpop.f32.mrf.mxu0
  %v495 = vadd.f32 %v426, %v494
  %v496 = vpop.f32.mrf.mxu0
  %v497 = vpop.f32.mrf.mxu0
  %v498 = vadd.f32 %v427, %v497
  %v499 = vpop.f32.mrf.mxu0
  %500 = vmatprep.mubr.bf16.mxu0 0
  %501 = vmatmul.mubr.bf16.gmra.mxu0 %v458
  %v502 = vpop.f32.mrf.mxu0
  %v503 = vadd.f32 %v428, %v502
  %v504 = vpop.f32.mrf.mxu0
  %v505 = vpop.f32.mrf.mxu0
  %v506 = vadd.f32 %v429, %v505
  %v507 = vpop.f32.mrf.mxu0
  %508 = vdwg.mxu0
  %v509 = vmax.f32 %v495, 0.0
  %v510 = vmax.f32 %v498, 0.0
  %v511 = vmax.f32 %v503, 0.0
  %v512 = vmax.f32 %v506, 0.0
  %v513 = vpack.c.bf16 %v510, %v509
  %v514 = vpack.c.bf16 %v512, %v511
  %v515 = vlaneseq
  %v516 = vshrl.u32 %v515, 7
  %v517 = vsub.s32 6, %v516
  %v518 = vrot.slane %v58, %v517
  %v519 = vlaneseq
  %v520 = vshrl.u32 %v519, 7
  %v521 = vsub.s32 7, %v520
  %v522 = vrot.slane %v58, %v521
  %v523 = vsel %vm171, %v518, %v522
  %v524 = vsel %vm172, %v518, %v522
  %v525 = vsel %vm173, %v518, %v522
  %v526 = vsel %vm174, %v518, %v522
  %v535 = vunpack.c.l.b16 %v38
  %v536 = vunpack.c.l.b16 %v39
  %v537 = vunpack.c.l.b16 %v40
  %v538 = vunpack.c.l.b16 %v41
  %v539 = vunpack.c.l.b16 %v42
  %v540 = vunpack.c.l.b16 %v43
  %v541 = vunpack.c.l.b16 %v44
  %v542 = vunpack.c.l.b16 %v45
  %v543 = vpack.c.b16 %v536, %v535
  %v544 = vpack.c.b16 %v538, %v537
  %v545 = vpack.c.b16 %v540, %v539
  %v546 = vpack.c.b16 %v542, %v541
  %v552 = vsel %vm297, %v513, 0
  %v555 = vsel %vm297, %v514, 0
  %557 = vmatprep.subr.bf16.mxu0 0
  %558 = vmatpush1.bf16.msra.mxu0 0
  %559 = vmatprep.subr.bf16.mxu0 0
  %560 = vmatpush1.bf16.msra.mxu0 0
  %561 = vmatprep.subr.bf16.mxu0 0
  %562 = vmatpush1.bf16.msra.mxu0 0
  %563 = vmatprep.subr.bf16.mxu0 0
  %564 = vmatpush1.bf16.msra.mxu0 0
  %565 = vmatprep.subr.bf16.mxu0 0
  %566 = vmatpush1.bf16.msra.mxu0 %v546
  %567 = vmatprep.subr.bf16.mxu0 0
  %568 = vmatpush1.bf16.msra.mxu0 %v545
  %569 = vmatprep.subr.bf16.mxu0 0
  %570 = vmatpush1.bf16.msra.mxu0 %v544
  %571 = vmatprep.subr.bf16.mxu0 0
  %572 = vmatpush1.bf16.msra.mxu0 %v543
  %573 = vmatprep.subr.bf16.mxu0 0
  %574 = vmatpush2.bf16.msra.mxu0 0
  %575 = vmatprep.subr.bf16.mxu0 0
  %576 = vmatpush2.bf16.msra.mxu0 0
  %577 = vmatprep.subr.bf16.mxu0 0
  %578 = vmatpush2.bf16.msra.mxu0 0
  %579 = vmatprep.subr.bf16.mxu0 0
  %580 = vmatpush2.bf16.msra.mxu0 0
  %581 = vmatprep.subr.bf16.mxu0 0
  %582 = vmatpush2.bf16.msra.mxu0 0
  %583 = vmatprep.subr.bf16.mxu0 0
  %584 = vmatpush2.bf16.msra.mxu0 0
  %585 = vmatprep.subr.bf16.mxu0 0
  %586 = vmatpush2.bf16.msra.mxu0 0
  %587 = vmatprep.subr.bf16.mxu0 0
  %588 = vmatpush2.bf16.msra.mxu0 0
  %589 = vmatprep.mubr.bf16.mxu0 0
  %590 = vmatmul.mubr.bf16.gmra.mxu0 %v552
  %v591 = vpop.f32.mrf.mxu0
  %v592 = vadd.f32 %v523, %v591
  %v593 = vpop.f32.mrf.mxu0
  %v594 = vpop.f32.mrf.mxu0
  %v595 = vadd.f32 %v524, %v594
  %v596 = vpop.f32.mrf.mxu0
  %597 = vmatprep.mubr.bf16.mxu0 0
  %598 = vmatmul.mubr.bf16.gmra.mxu0 %v555
  %v599 = vpop.f32.mrf.mxu0
  %v600 = vadd.f32 %v525, %v599
  %v601 = vpop.f32.mrf.mxu0
  %v602 = vpop.f32.mrf.mxu0
  %v603 = vadd.f32 %v526, %v602
  %v604 = vpop.f32.mrf.mxu0
  %605 = vdwg.mxu0
  %v606 = vmax.f32 %v592, 0.0
  %v607 = vmax.f32 %v595, 0.0
  %v608 = vmax.f32 %v600, 0.0
  %v609 = vmax.f32 %v603, 0.0
  %v610 = vpack.c.bf16 %v607, %v606
  %v611 = vpack.c.bf16 %v609, %v608
  %v613 = vsel %vm89, %v19, 0
  %615 = vmatprep.subr.bf16.mxu0 0
  %616 = vmatpush1.bf16.msra.mxu0 0
  %617 = vmatprep.subr.bf16.mxu0 0
  %618 = vmatpush1.bf16.msra.mxu0 0
  %619 = vmatprep.subr.bf16.mxu0 0
  %620 = vmatpush1.bf16.msra.mxu0 0
  %621 = vmatprep.subr.bf16.mxu0 0
  %622 = vmatpush1.bf16.msra.mxu0 0
  %623 = vmatprep.subr.bf16.mxu0 0
  %624 = vmatpush1.bf16.msra.mxu0 0
  %625 = vmatprep.subr.bf16.mxu0 0
  %626 = vmatpush1.bf16.msra.mxu0 0
  %627 = vmatprep.subr.bf16.mxu0 0
  %628 = vmatpush1.bf16.msra.mxu0 %v611
  %629 = vmatprep.subr.bf16.mxu0 0
  %630 = vmatpush1.bf16.msra.mxu0 %v610
  %631 = vmatprep.subr.bf16.mxu0 0
  %632 = vmatpush2.bf16.msra.mxu0 0
  %633 = vmatprep.subr.bf16.mxu0 0
  %634 = vmatpush2.bf16.msra.mxu0 0
  %635 = vmatprep.subr.bf16.mxu0 0
  %636 = vmatpush2.bf16.msra.mxu0 0
  %637 = vmatprep.subr.bf16.mxu0 0
  %638 = vmatpush2.bf16.msra.mxu0 0
  %639 = vmatprep.subr.bf16.mxu0 0
  %640 = vmatpush2.bf16.msra.mxu0 0
  %641 = vmatprep.subr.bf16.mxu0 0
  %642 = vmatpush2.bf16.msra.mxu0 0
  %643 = vmatprep.subr.bf16.mxu0 0
  %644 = vmatpush2.bf16.msra.mxu0 0
  %645 = vmatprep.subr.bf16.mxu0 0
  %646 = vmatpush2.bf16.msra.mxu0 0
  %647 = vmatprep.mubr.bf16.mxu0 0
  %648 = vmatmul.mubr.bf16.gmra.mxu0 %v613
  %v649 = vpop.f32.mrf.mxu0
  %v650 = vadd.f32 0.0, %v649
  %v651 = vpop.f32.mrf.mxu0
  %v652 = vpop.f32.mrf.mxu0
  %v653 = vpop.f32.mrf.mxu0
  %654 = vdwg.mxu0
  %v655 = vpack.c.bf16 %v650, %v650
  %v656 = vlaneseq
  %v657 = vshrl.u32 %v656, 7
  %v658 = vsub.s32 0, %v657
  %v659 = vrot.slane %v59, %v658
  %v668 = vunpack.c.l.b16 %v46
  %v669 = vunpack.c.l.b16 %v47
  %v670 = vunpack.c.l.b16 %v48
  %v671 = vunpack.c.l.b16 %v49
  %v672 = vunpack.c.l.b16 %v50
  %v673 = vunpack.c.l.b16 %v51
  %v674 = vunpack.c.l.b16 %v52
  %v675 = vunpack.c.l.b16 %v53
  %v676 = vpack.c.b16 %v669, %v668
  %v677 = vpack.c.b16 %v671, %v670
  %v678 = vpack.c.b16 %v673, %v672
  %v679 = vpack.c.b16 %v675, %v674
  %v685 = vsel %vm297, %v655, 0
  %687 = vmatprep.subr.bf16.mxu0 0
  %688 = vmatpush1.bf16.msra.mxu0 0
  %689 = vmatprep.subr.bf16.mxu0 0
  %690 = vmatpush1.bf16.msra.mxu0 0
  %691 = vmatprep.subr.bf16.mxu0 0
  %692 = vmatpush1.bf16.msra.mxu0 0
  %693 = vmatprep.subr.bf16.mxu0 0
  %694 = vmatpush1.bf16.msra.mxu0 0
  %695 = vmatprep.subr.bf16.mxu0 0
  %696 = vmatpush1.bf16.msra.mxu0 %v679
  %697 = vmatprep.subr.bf16.mxu0 0
  %698 = vmatpush1.bf16.msra.mxu0 %v678
  %699 = vmatprep.subr.bf16.mxu0 0
  %700 = vmatpush1.bf16.msra.mxu0 %v677
  %701 = vmatprep.subr.bf16.mxu0 0
  %702 = vmatpush1.bf16.msra.mxu0 %v676
  %703 = vmatprep.subr.bf16.mxu0 0
  %704 = vmatpush2.bf16.msra.mxu0 0
  %705 = vmatprep.subr.bf16.mxu0 0
  %706 = vmatpush2.bf16.msra.mxu0 0
  %707 = vmatprep.subr.bf16.mxu0 0
  %708 = vmatpush2.bf16.msra.mxu0 0
  %709 = vmatprep.subr.bf16.mxu0 0
  %710 = vmatpush2.bf16.msra.mxu0 0
  %711 = vmatprep.subr.bf16.mxu0 0
  %712 = vmatpush2.bf16.msra.mxu0 0
  %713 = vmatprep.subr.bf16.mxu0 0
  %714 = vmatpush2.bf16.msra.mxu0 0
  %715 = vmatprep.subr.bf16.mxu0 0
  %716 = vmatpush2.bf16.msra.mxu0 0
  %717 = vmatprep.subr.bf16.mxu0 0
  %718 = vmatpush2.bf16.msra.mxu0 0
  %719 = vmatprep.mubr.bf16.mxu0 0
  %720 = vmatmul.mubr.bf16.gmra.mxu0 %v685
  %v721 = vpop.f32.mrf.mxu0
  %v722 = vadd.f32 %v659, %v721
  %v723 = vpop.f32.mrf.mxu0
  %v724 = vpop.f32.mrf.mxu0
  %v725 = vpop.f32.mrf.mxu0
  %726 = vdwg.mxu0
  %v727 = vmax.f32 %v722, 0.0
  %v728 = vpack.c.bf16 %v727, %v727
  %v729 = vlaneseq
  %v730 = vshrl.u32 %v729, 7
  %v731 = vsub.s32 1, %v730
  %v732 = vrot.slane %v59, %v731
  %v737 = vunpack.c.l.b16 %v54
  %v738 = vunpack.c.l.b16 %v55
  %v739 = vunpack.c.l.b16 %v56
  %v740 = vunpack.c.l.b16 %v57
  %v741 = vpack.c.b16 %v738, %v737
  %v742 = vpack.c.b16 %v740, %v739
  %v746 = vsel %vm89, %v728, 0
  %748 = vmatprep.subr.bf16.mxu0 0
  %749 = vmatpush1.bf16.msra.mxu0 0
  %750 = vmatprep.subr.bf16.mxu0 0
  %751 = vmatpush1.bf16.msra.mxu0 0
  %752 = vmatprep.subr.bf16.mxu0 0
  %753 = vmatpush1.bf16.msra.mxu0 0
  %754 = vmatprep.subr.bf16.mxu0 0
  %755 = vmatpush1.bf16.msra.mxu0 0
  %756 = vmatprep.subr.bf16.mxu0 0
  %757 = vmatpush1.bf16.msra.mxu0 0
  %758 = vmatprep.subr.bf16.mxu0 0
  %759 = vmatpush1.bf16.msra.mxu0 0
  %760 = vmatprep.subr.bf16.mxu0 0
  %761 = vmatpush1.bf16.msra.mxu0 %v742
  %762 = vmatprep.subr.bf16.mxu0 0
  %763 = vmatpush1.bf16.msra.mxu0 %v741
  %764 = vmatprep.subr.bf16.mxu0 0
  %765 = vmatpush2.bf16.msra.mxu0 0
  %766 = vmatprep.subr.bf16.mxu0 0
  %767 = vmatpush2.bf16.msra.mxu0 0
  %768 = vmatprep.subr.bf16.mxu0 0
  %769 = vmatpush2.bf16.msra.mxu0 0
  %770 = vmatprep.subr.bf16.mxu0 0
  %771 = vmatpush2.bf16.msra.mxu0 0
  %772 = vmatprep.subr.bf16.mxu0 0
  %773 = vmatpush2.bf16.msra.mxu0 0
  %774 = vmatprep.subr.bf16.mxu0 0
  %775 = vmatpush2.bf16.msra.mxu0 0
  %776 = vmatprep.subr.bf16.mxu0 0
  %777 = vmatpush2.bf16.msra.mxu0 0
  %778 = vmatprep.subr.bf16.mxu0 0
  %779 = vmatpush2.bf16.msra.mxu0 0
  %780 = vmatprep.mubr.bf16.mxu0 0
  %781 = vmatmul.mubr.bf16.gmra.mxu0 %v746
  %v782 = vpop.f32.mrf.mxu0
  %v783 = vadd.f32 %v732, %v782
  %v784 = vpop.f32.mrf.mxu0
  %v785 = vpop.f32.mrf.mxu0
  %v786 = vpop.f32.mrf.mxu0
  %787 = vdwg.mxu0
  %v788 = vmax.f32 %v783, 0.0
  %v789 = vlaneseq
  %v790 = vshrl.u32 %v789, 7
  %v791 = vsub.s32 2, %v790
  %v792 = vrot.slane %v59, %v791
  %v793 = vmul.f32 %v788, %v792
  %vm794 = vcmask 123904
  %v795 = vsel %vm794, %v793, 0.0
  %796 = vadd.xlane.f32.xlu0 %v795
  %v797 = vpop.xlane.xlu0 %796
  %v798 = vlaneseq
  %v799 = vshrl.u32 %v798, 7
  %v800 = vsub.s32 3, %v799
  %v801 = vrot.slane %v59, %v800
  %v802 = vadd.f32 %v797, %v801
  %v803 = vxor.u32 %v802, 2147483648
  %v804 = vmul.f32 %v803, 1.442695
  %v805 = vpow.pop %v804
  %v806 = vadd.f32 %v805, 1.0
  %v807 = vrcp.pop %v806
  %v808 = vmul.f32 1.0, %v807
  %vm809 = vcmask 1024
  %810 = vst.msk [vmem:[%s3] sm:$0x3] %vm809, %v808
  // Predicated region
  $region14: #{tpu_custom_call.1} parent=0 // pred_check
    _
  $region15: #{tpu_custom_call.1} parent=0 // pred_check_branch
    %812 = sbr.rel (0) target = $region17
  $region16: #{tpu_custom_call.1} parent=0 // pred_region
    _
  $region17: #{tpu_custom_call.1} parent=0 // pred_fallthru
    _
  // Predicated region
  $region18: #{tpu_custom_call.1} parent=0 // pred_check
    _
  $region19: #{tpu_custom_call.1} parent=0 // pred_check_branch
    %814 = sbr.rel (0) target = $region21
  $region20: #{tpu_custom_call.1} parent=0 // pred_region
    _
  $region21: #{tpu_custom_call.1} parent=0 // pred_fallthru
    _

</llo_original>
